<compile_context>
chip_gen: v6e
topology: v6e:2x2x1
jax: 0.10.0
libtpu: 0.0.40
codegen_flags: <defaults>
</compile_context>

<pallas_src>
import functools

import jax
import jax.numpy as jnp
import numpy as np
from jax.experimental import pallas as pl
from jax.experimental.pallas import tpu as pltpu


# ----------------------------- Pallas kernels ------------------------------ #
def _ohem_l1_partial(inp, tgt, inv_n):
    """OHEMF12d(F.l1_loss) contribution of ONE batch row (shape (1,N) or (N,1)).

    All rows have the same length, so summing per-row means and dividing by B
    once (in the caller) equals the torch mean over the full (B, N) set.
    """
    r = inp - tgt
    d = jnp.abs(r)                                    # l1_loss(reduction='none')
    dmin = jnp.min(d, keepdims=True)                  # (1, 1) per-row min
    dmax = jnp.max(d, keepdims=True)                  # (1, 1) per-row max
    # 10 * (d - dmin) / (dmax - dmin); divide goes to the EUP (approx recip).
    scale = 10.0 * pl.reciprocal(dmax - dmin, approx=True)
    dn = (d - dmin) * scale
    return jnp.sum(jnp.abs(dn * r), keepdims=True) * inv_n     # (1, 1)


def _heat_body(lay_ref, heat_ref, g_ref, out_ref, *, cof, B, H, W):
    """Fused reflect-stencil + directional means + OHEM-L1 loss.

    lay_ref / heat_ref / g_ref : (B*H, W) float32 in VMEM (g_ref may be None)
    out_ref                    : (1, 1)  float32 in SMEM (scalar loss)
    """
    inv_B = 1.0 / B
    inv_H = 1.0 / H
    inv_W = 1.0 / W

    total = jnp.zeros((1, 1), jnp.float32)
    for b in range(B):                         # B is static & small: unrolled
        off = b * H                            # static per-batch row offset
        lay = lay_ref[pl.ds(off, H), :]
        heat = heat_ref[pl.ds(off, H), :]
        if g_ref is None:
            g = None
            hg = heat                          # G == 1  ->  heat * G == heat
        else:
            g = g_ref[pl.ds(off, H), :]
            hg = heat * g                      # computed once, reused below

        # jacobi(F.pad(heat*G, [1,1,1,1], mode='reflect')):
        # reflect-padded 4-neighbour average built from shifted slices.
        up = jnp.concatenate([hg[1:2, :], hg[:H - 1, :]], axis=0)
        down = jnp.concatenate([hg[1:, :], hg[H - 2:H - 1, :]], axis=0)
        left = jnp.concatenate([hg[:, 1:2], hg[:, :W - 1]], axis=1)
        right = jnp.concatenate([hg[:, 1:], hg[:, W - 2:W - 1]], axis=1)
        jac = 0.25 * (up + down + left + right)

        x = jac + cof * lay                    # f = cof * layout
        if g is not None:
            x = g * x                          # x = G * (jacobi(...) + f)

        # torch dim=2 (H) / dim=3 (W) means (channel dim == 1 is squeezed).
        v = jnp.sum(x, axis=0, keepdims=True) * inv_H     # (1, W) vertical
        tv = jnp.sum(hg, axis=0, keepdims=True) * inv_H
        h = jnp.sum(x, axis=1, keepdims=True) * inv_W     # (H, 1) horizontal
        th = jnp.sum(hg, axis=1, keepdims=True) * inv_W

        total = (total
                 + _ohem_l1_partial(v, tv, inv_W)
                 + _ohem_l1_partial(h, th, inv_H))

    out_ref[0, 0] = jnp.sum(total) * inv_B


def _heat_kernel_no_g(lay_ref, heat_ref, out_ref, *, cof, B, H, W):
    _heat_body(lay_ref, heat_ref, None, out_ref, cof=cof, B=B, H=H, W=W)


def _heat_kernel_g(lay_ref, heat_ref, g_ref, out_ref, *, cof, B, H, W):
    _heat_body(lay_ref, heat_ref, g_ref, out_ref, cof=cof, B=B, H=H, W=W)


# ------------------------------ host wrapper ------------------------------ #
def _build_G(shape, nx, length, bcs):
    """Boundary mask G (host-side glue; only built when bcs is non-empty)."""
    G = jnp.ones(shape, jnp.float32)
    if bcs is None or len(bcs) == 0 or len(bcs[0]) == 0:
        return G
    for bc in bcs:
        if bc[0][1] == 0 and bc[1][1] == 0:
            s, e = round(bc[0][0] * nx / length), round(bc[1][0] * nx / length)
            G = G.at[..., s:e, :1].set(0.0)
        elif bc[0][1] == length and bc[1][1] == length:
            s, e = round(bc[0][0] * nx / length), round(bc[1][0] * nx / length)
            G = G.at[..., s:e, -1:].set(0.0)
        elif bc[0][0] == 0 and bc[1][0] == 0:
            s, e = round(bc[0][1] * nx / length), round(bc[1][1] * nx / length)
            G = G.at[..., :1, s:e].set(0.0)
        elif bc[0][0] == length and bc[1][0] == length:
            s, e = round(bc[0][1] * nx / length), round(bc[1][1] * nx / length)
            G = G.at[..., -1:, s:e].set(0.0)
        else:
            raise ValueError("bc error!")
    return G


def heat_conservation_loss(layout, heat, *, nx=21, length=0.1, bcs=None):
    """JAX/Pallas equivalent of heat_conservation.forward. Inputs NCHW, C == 1."""
    assert layout.ndim == 4 and layout.shape[1] == 1
    assert heat.shape == layout.shape
    B, _, H, W = layout.shape
    assert H >= 2 and W >= 2, "reflect padding requires spatial dims >= 2"

    stride = length / (nx - 1)
    cof = 0.25 * stride ** 2 / 1.0            # TEMPER_COEFFICIENT = 1

    # Lane-dense 2D layout: W -> lanes, B*H -> sublanes (free reshape in XLA).
    lay = layout[:, 0].astype(jnp.float32).reshape(B * H, W)
    ht = heat[:, 0].astype(jnp.float32).reshape(B * H, W)

    has_g = not (bcs is None or len(bcs) == 0 or len(bcs[0]) == 0)

    vmem = pl.BlockSpec(memory_space=pltpu.MemorySpace.VMEM)
    smem = pl.BlockSpec(memory_space=pltpu.MemorySpace.SMEM)
    n_in = 3 if has_g else 2
    cost = pl.CostEstimate(
        flops=25 * B * H * W,                 # stencil + means + OHEM (rough)
        transcendentals=4 * B,                # approx reciprocals
        bytes_accessed=4 * (n_in * B * H * W + 1),
    )

    if has_g:
        G = _build_G((B, H, W), nx, length, bcs).reshape(B * H, W)
        kern = functools.partial(_heat_kernel_g, cof=cof, B=B, H=H, W=W)
        args, in_specs = (lay, ht, G), [vmem, vmem, vmem]
    else:
        # Fast path: G is all ones -> skip the G input and its multiplies.
        kern = functools.partial(_heat_kernel_no_g, cof=cof, B=B, H=H, W=W)
        args, in_specs = (lay, ht), [vmem, vmem]

    out = pl.pallas_call(
        kern,
        out_shape=jax.ShapeDtypeStruct((1, 1), jnp.float32),
        in_specs=in_specs,
        out_specs=smem,
        cost_estimate=cost,
    )(*args)
    return out[0, 0]


# --------------------------- pure-JAX reference ---------------------------- #
def _reference(layout, heat, *, nx, length, bcs=None):
    stride = length / (nx - 1)
    cof = 0.25 * stride ** 2
    lay = layout[:, 0].astype(jnp.float32)
    ht = heat[:, 0].astype(jnp.float32)
    G = _build_G(ht.shape, nx, length, bcs)
    hp = jnp.pad(ht * G, ((0, 0), (1, 1), (1, 1)), mode="reflect")
    H, W = lay.shape[1], lay.shape[2]
    jac = 0.25 * (hp[:, 0:H, 1:W + 1] + hp[:, 2:H + 2, 1:W + 1]
                  + hp[:, 1:H + 1, 0:W] + hp[:, 1:H + 1, 2:W + 2])
    x = G * (jac + cof * lay)
    hg = ht * G

    def ohem(inp, tgt):
        r = inp - tgt
        d = jnp.abs(r)
        dmin = jnp.min(d, axis=1, keepdims=True)
        dmax = jnp.max(d, axis=1, keepdims=True)
        dn = 10.0 * (d - dmin) / (dmax - dmin)
        return jnp.mean(jnp.abs(dn * r))

    return (ohem(jnp.mean(x, 1), jnp.mean(hg, 1))
            + ohem(jnp.mean(x, 2), jnp.mean(hg, 2)))


# ---------------------------------- main ----------------------------------- #
if __name__ == "__main__":
    key = jax.random.PRNGKey(0)
    k1, k2 = jax.random.split(key)

    B, C, nx = 2, 1, 16           # small synthetic problem (module default nx=21)
    length = 0.1
    layout_in = jax.random.uniform(k1, (B, C, nx, nx), dtype=jnp.float32)
    heat_in = jax.random.uniform(k2, (B, C, nx, nx), dtype=jnp.float32)

    # Tolerance is loosened slightly vs 1e-5 because the OHEM normalization
    # uses the EUP approximate reciprocal (pl.reciprocal(..., approx=True)).
    RTOL, ATOL = 5e-3, 1e-6

    # Case 1: no boundary conditions (common fast path: no G input at all).
    loss = jax.block_until_ready(
        heat_conservation_loss(layout_in, heat_in, nx=nx, length=length, bcs=None))
    ref = _reference(layout_in, heat_in, nx=nx, length=length, bcs=None)
    np.testing.assert_allclose(np.asarray(loss), np.asarray(ref), rtol=RTOL, atol=ATOL)

    # Case 2: with boundary conditions (G-mask kernel variant).
    bcs = [[[0.025, 0.0], [0.075, 0.0]]]
    loss2 = jax.block_until_ready(
        heat_conservation_loss(layout_in, heat_in, nx=nx, length=length, bcs=bcs))
    ref2 = _reference(layout_in, heat_in, nx=nx, length=length, bcs=bcs)
    np.testing.assert_allclose(np.asarray(loss2), np.asarray(ref2), rtol=RTOL, atol=ATOL)

    print("KERNEL_OK")
</pallas_src>

<mosaic_0001>
module attributes {stable_mosaic.version = 11 : i64} {
  func.func @_heat_kernel_no_g(%arg0: memref<32x16xf32, #tpu.memory_space<vmem>>, %arg1: memref<32x16xf32, #tpu.memory_space<vmem>>, %arg2: memref<1x1xf32, #tpu.memory_space<smem>>) attributes {dimension_semantics = [], scalar_prefetch = 0 : i64, scratch_operands = 0 : i64, tpu.core_type = #tpu.core_type<tc>} {
    %cst = arith.constant 0.000000e+00 : f32
    %0 = vector.broadcast %cst : f32 to vector<1x1xf32>
    %c0 = arith.constant 0 : index
    %c0_0 = arith.constant 0 : index
    %1 = vector.load %arg0[%c0, %c0_0] : memref<32x16xf32, #tpu.memory_space<vmem>>, vector<16x16xf32>
    %c0_1 = arith.constant 0 : index
    %c0_2 = arith.constant 0 : index
    %2 = vector.load %arg1[%c0_1, %c0_2] : memref<32x16xf32, #tpu.memory_space<vmem>>, vector<16x16xf32>
    %3 = vector.extract_strided_slice %2 {offsets = [1, 0], sizes = [1, 16], strides = [1, 1]} : vector<16x16xf32> to vector<1x16xf32>
    %4 = vector.extract_strided_slice %2 {offsets = [0, 0], sizes = [15, 16], strides = [1, 1]} : vector<16x16xf32> to vector<15x16xf32>
    %5 = tpu.concatenate %3, %4 in 0 : vector<1x16xf32>, vector<15x16xf32> -> vector<16x16xf32>
    %6 = vector.extract_strided_slice %2 {offsets = [1, 0], sizes = [15, 16], strides = [1, 1]} : vector<16x16xf32> to vector<15x16xf32>
    %7 = vector.extract_strided_slice %2 {offsets = [14, 0], sizes = [1, 16], strides = [1, 1]} : vector<16x16xf32> to vector<1x16xf32>
    %8 = tpu.concatenate %6, %7 in 0 : vector<15x16xf32>, vector<1x16xf32> -> vector<16x16xf32>
    %9 = vector.extract_strided_slice %2 {offsets = [0, 1], sizes = [16, 1], strides = [1, 1]} : vector<16x16xf32> to vector<16x1xf32>
    %10 = vector.extract_strided_slice %2 {offsets = [0, 0], sizes = [16, 15], strides = [1, 1]} : vector<16x16xf32> to vector<16x15xf32>
    %11 = tpu.concatenate %9, %10 in 1 : vector<16x1xf32>, vector<16x15xf32> -> vector<16x16xf32>
    %12 = vector.extract_strided_slice %2 {offsets = [0, 1], sizes = [16, 15], strides = [1, 1]} : vector<16x16xf32> to vector<16x15xf32>
    %13 = vector.extract_strided_slice %2 {offsets = [0, 14], sizes = [16, 1], strides = [1, 1]} : vector<16x16xf32> to vector<16x1xf32>
    %14 = tpu.concatenate %12, %13 in 1 : vector<16x15xf32>, vector<16x1xf32> -> vector<16x16xf32>
    %15 = arith.addf %5, %8 : vector<16x16xf32>
    %16 = arith.addf %15, %11 : vector<16x16xf32>
    %17 = arith.addf %16, %14 : vector<16x16xf32>
    %cst_3 = arith.constant 2.500000e-01 : f32
    %18 = vector.broadcast %cst_3 : f32 to vector<16x16xf32>
    %19 = arith.mulf %18, %17 : vector<16x16xf32>
    %cst_4 = arith.constant 1.11111112E-5 : f32
    %20 = vector.broadcast %cst_4 : f32 to vector<16x16xf32>
    %21 = arith.mulf %20, %1 : vector<16x16xf32>
    %22 = arith.addf %19, %21 : vector<16x16xf32>
    %cst_5 = arith.constant dense<0.000000e+00> : vector<16xf32>
    %23 = vector.multi_reduction <add>, %22, %cst_5 [0] : vector<16x16xf32> to vector<16xf32>
    %24 = vector.shape_cast %23 : vector<16xf32> to vector<1x16xf32>
    %cst_6 = arith.constant 6.250000e-02 : f32
    %25 = vector.broadcast %cst_6 : f32 to vector<1x16xf32>
    %26 = arith.mulf %24, %25 : vector<1x16xf32>
    %cst_7 = arith.constant dense<0.000000e+00> : vector<16xf32>
    %27 = vector.multi_reduction <add>, %2, %cst_7 [0] : vector<16x16xf32> to vector<16xf32>
    %28 = vector.shape_cast %27 : vector<16xf32> to vector<1x16xf32>
    %cst_8 = arith.constant 6.250000e-02 : f32
    %29 = vector.broadcast %cst_8 : f32 to vector<1x16xf32>
    %30 = arith.mulf %28, %29 : vector<1x16xf32>
    %cst_9 = arith.constant dense<0.000000e+00> : vector<16xf32>
    %31 = vector.multi_reduction <add>, %22, %cst_9 [1] : vector<16x16xf32> to vector<16xf32>
    %32 = vector.shape_cast %31 : vector<16xf32> to vector<16x1xf32>
    %cst_10 = arith.constant 6.250000e-02 : f32
    %33 = vector.broadcast %cst_10 : f32 to vector<16x1xf32>
    %34 = arith.mulf %32, %33 : vector<16x1xf32>
    %cst_11 = arith.constant dense<0.000000e+00> : vector<16xf32>
    %35 = vector.multi_reduction <add>, %2, %cst_11 [1] : vector<16x16xf32> to vector<16xf32>
    %36 = vector.shape_cast %35 : vector<16xf32> to vector<16x1xf32>
    %cst_12 = arith.constant 6.250000e-02 : f32
    %37 = vector.broadcast %cst_12 : f32 to vector<16x1xf32>
    %38 = arith.mulf %36, %37 : vector<16x1xf32>
    %39 = arith.subf %26, %30 : vector<1x16xf32>
    %40 = math.absf %39 : vector<1x16xf32>
    %41 = vector.shape_cast %40 : vector<1x16xf32> to vector<1x1x16xf32>
    %cst_13 = arith.constant dense<0x7F800000> : vector<1xf32>
    %42 = vector.multi_reduction <minimumf>, %41, %cst_13 [1, 2] : vector<1x1x16xf32> to vector<1xf32>
    %43 = vector.shape_cast %42 : vector<1xf32> to vector<1x1x1xf32>
    %44 = vector.extract %43[0, 0, 0] : f32 from vector<1x1x1xf32>
    %45 = vector.broadcast %44 : f32 to vector<1x1xf32>
    %46 = vector.shape_cast %40 : vector<1x16xf32> to vector<1x1x16xf32>
    %cst_14 = arith.constant dense<0xFF800000> : vector<1xf32>
    %47 = vector.multi_reduction <maximumf>, %46, %cst_14 [1, 2] : vector<1x1x16xf32> to vector<1xf32>
    %48 = vector.shape_cast %47 : vector<1xf32> to vector<1x1x1xf32>
    %49 = vector.extract %48[0, 0, 0] : f32 from vector<1x1x1xf32>
    %50 = vector.broadcast %49 : f32 to vector<1x1xf32>
    %51 = arith.subf %50, %45 : vector<1x1xf32>
    %52 = tpu.reciprocal %51 {approx = true} : vector<1x1xf32> -> vector<1x1xf32>
    %cst_15 = arith.constant 1.000000e+01 : f32
    %53 = vector.broadcast %cst_15 : f32 to vector<1x1xf32>
    %54 = arith.mulf %53, %52 : vector<1x1xf32>
    %55 = vector.broadcast %45 : vector<1x1xf32> to vector<1x16xf32>
    %56 = arith.subf %40, %55 : vector<1x16xf32>
    %57 = vector.broadcast %54 : vector<1x1xf32> to vector<1x16xf32>
    %58 = arith.mulf %56, %57 : vector<1x16xf32>
    %59 = arith.mulf %58, %39 : vector<1x16xf32>
    %60 = math.absf %59 : vector<1x16xf32>
    %61 = vector.shape_cast %60 : vector<1x16xf32> to vector<1x1x16xf32>
    %cst_16 = arith.constant dense<0.000000e+00> : vector<1xf32>
    %62 = vector.multi_reduction <add>, %61, %cst_16 [1, 2] : vector<1x1x16xf32> to vector<1xf32>
    %63 = vector.shape_cast %62 : vector<1xf32> to vector<1x1x1xf32>
    %64 = vector.extract %63[0, 0, 0] : f32 from vector<1x1x1xf32>
    %65 = vector.broadcast %64 : f32 to vector<1x1xf32>
    %cst_17 = arith.constant 6.250000e-02 : f32
    %66 = vector.broadcast %cst_17 : f32 to vector<1x1xf32>
    %67 = arith.mulf %65, %66 : vector<1x1xf32>
    %68 = arith.addf %0, %67 : vector<1x1xf32>
    %69 = arith.subf %34, %38 : vector<16x1xf32>
    %70 = math.absf %69 : vector<16x1xf32>
    %71 = vector.shape_cast %70 : vector<16x1xf32> to vector<1x16x1xf32>
    %cst_18 = arith.constant dense<0x7F800000> : vector<1xf32>
    %72 = vector.multi_reduction <minimumf>, %71, %cst_18 [1, 2] : vector<1x16x1xf32> to vector<1xf32>
    %73 = vector.shape_cast %72 : vector<1xf32> to vector<1x1x1xf32>
    %74 = vector.extract %73[0, 0, 0] : f32 from vector<1x1x1xf32>
    %75 = vector.broadcast %74 : f32 to vector<1x1xf32>
    %76 = vector.shape_cast %70 : vector<16x1xf32> to vector<1x16x1xf32>
    %cst_19 = arith.constant dense<0xFF800000> : vector<1xf32>
    %77 = vector.multi_reduction <maximumf>, %76, %cst_19 [1, 2] : vector<1x16x1xf32> to vector<1xf32>
    %78 = vector.shape_cast %77 : vector<1xf32> to vector<1x1x1xf32>
    %79 = vector.extract %78[0, 0, 0] : f32 from vector<1x1x1xf32>
    %80 = vector.broadcast %79 : f32 to vector<1x1xf32>
    %81 = arith.subf %80, %75 : vector<1x1xf32>
    %82 = tpu.reciprocal %81 {approx = true} : vector<1x1xf32> -> vector<1x1xf32>
    %cst_20 = arith.constant 1.000000e+01 : f32
    %83 = vector.broadcast %cst_20 : f32 to vector<1x1xf32>
    %84 = arith.mulf %83, %82 : vector<1x1xf32>
    %85 = vector.broadcast %75 : vector<1x1xf32> to vector<16x1xf32>
    %86 = arith.subf %70, %85 : vector<16x1xf32>
    %87 = vector.broadcast %84 : vector<1x1xf32> to vector<16x1xf32>
    %88 = arith.mulf %86, %87 : vector<16x1xf32>
    %89 = arith.mulf %88, %69 : vector<16x1xf32>
    %90 = math.absf %89 : vector<16x1xf32>
    %91 = vector.shape_cast %90 : vector<16x1xf32> to vector<1x16x1xf32>
    %cst_21 = arith.constant dense<0.000000e+00> : vector<1xf32>
    %92 = vector.multi_reduction <add>, %91, %cst_21 [1, 2] : vector<1x16x1xf32> to vector<1xf32>
    %93 = vector.shape_cast %92 : vector<1xf32> to vector<1x1x1xf32>
    %94 = vector.extract %93[0, 0, 0] : f32 from vector<1x1x1xf32>
    %95 = vector.broadcast %94 : f32 to vector<1x1xf32>
    %cst_22 = arith.constant 6.250000e-02 : f32
    %96 = vector.broadcast %cst_22 : f32 to vector<1x1xf32>
    %97 = arith.mulf %95, %96 : vector<1x1xf32>
    %98 = arith.addf %68, %97 : vector<1x1xf32>
    %c16 = arith.constant 16 : index
    %c0_23 = arith.constant 0 : index
    %99 = vector.load %arg0[%c16, %c0_23] : memref<32x16xf32, #tpu.memory_space<vmem>>, vector<16x16xf32>
    %c16_24 = arith.constant 16 : index
    %c0_25 = arith.constant 0 : index
    %100 = vector.load %arg1[%c16_24, %c0_25] : memref<32x16xf32, #tpu.memory_space<vmem>>, vector<16x16xf32>
    %101 = vector.extract_strided_slice %100 {offsets = [1, 0], sizes = [1, 16], strides = [1, 1]} : vector<16x16xf32> to vector<1x16xf32>
    %102 = vector.extract_strided_slice %100 {offsets = [0, 0], sizes = [15, 16], strides = [1, 1]} : vector<16x16xf32> to vector<15x16xf32>
    %103 = tpu.concatenate %101, %102 in 0 : vector<1x16xf32>, vector<15x16xf32> -> vector<16x16xf32>
    %104 = vector.extract_strided_slice %100 {offsets = [1, 0], sizes = [15, 16], strides = [1, 1]} : vector<16x16xf32> to vector<15x16xf32>
    %105 = vector.extract_strided_slice %100 {offsets = [14, 0], sizes = [1, 16], strides = [1, 1]} : vector<16x16xf32> to vector<1x16xf32>
    %106 = tpu.concatenate %104, %105 in 0 : vector<15x16xf32>, vector<1x16xf32> -> vector<16x16xf32>
    %107 = vector.extract_strided_slice %100 {offsets = [0, 1], sizes = [16, 1], strides = [1, 1]} : vector<16x16xf32> to vector<16x1xf32>
    %108 = vector.extract_strided_slice %100 {offsets = [0, 0], sizes = [16, 15], strides = [1, 1]} : vector<16x16xf32> to vector<16x15xf32>
    %109 = tpu.concatenate %107, %108 in 1 : vector<16x1xf32>, vector<16x15xf32> -> vector<16x16xf32>
    %110 = vector.extract_strided_slice %100 {offsets = [0, 1], sizes = [16, 15], strides = [1, 1]} : vector<16x16xf32> to vector<16x15xf32>
    %111 = vector.extract_strided_slice %100 {offsets = [0, 14], sizes = [16, 1], strides = [1, 1]} : vector<16x16xf32> to vector<16x1xf32>
    %112 = tpu.concatenate %110, %111 in 1 : vector<16x15xf32>, vector<16x1xf32> -> vector<16x16xf32>
    %113 = arith.addf %103, %106 : vector<16x16xf32>
    %114 = arith.addf %113, %109 : vector<16x16xf32>
    %115 = arith.addf %114, %112 : vector<16x16xf32>
    %cst_26 = arith.constant 2.500000e-01 : f32
    %116 = vector.broadcast %cst_26 : f32 to vector<16x16xf32>
    %117 = arith.mulf %116, %115 : vector<16x16xf32>
    %cst_27 = arith.constant 1.11111112E-5 : f32
    %118 = vector.broadcast %cst_27 : f32 to vector<16x16xf32>
    %119 = arith.mulf %118, %99 : vector<16x16xf32>
    %120 = arith.addf %117, %119 : vector<16x16xf32>
    %cst_28 = arith.constant dense<0.000000e+00> : vector<16xf32>
    %121 = vector.multi_reduction <add>, %120, %cst_28 [0] : vector<16x16xf32> to vector<16xf32>
    %122 = vector.shape_cast %121 : vector<16xf32> to vector<1x16xf32>
    %cst_29 = arith.constant 6.250000e-02 : f32
    %123 = vector.broadcast %cst_29 : f32 to vector<1x16xf32>
    %124 = arith.mulf %122, %123 : vector<1x16xf32>
    %cst_30 = arith.constant dense<0.000000e+00> : vector<16xf32>
    %125 = vector.multi_reduction <add>, %100, %cst_30 [0] : vector<16x16xf32> to vector<16xf32>
    %126 = vector.shape_cast %125 : vector<16xf32> to vector<1x16xf32>
    %cst_31 = arith.constant 6.250000e-02 : f32
    %127 = vector.broadcast %cst_31 : f32 to vector<1x16xf32>
    %128 = arith.mulf %126, %127 : vector<1x16xf32>
    %cst_32 = arith.constant dense<0.000000e+00> : vector<16xf32>
    %129 = vector.multi_reduction <add>, %120, %cst_32 [1] : vector<16x16xf32> to vector<16xf32>
    %130 = vector.shape_cast %129 : vector<16xf32> to vector<16x1xf32>
    %cst_33 = arith.constant 6.250000e-02 : f32
    %131 = vector.broadcast %cst_33 : f32 to vector<16x1xf32>
    %132 = arith.mulf %130, %131 : vector<16x1xf32>
    %cst_34 = arith.constant dense<0.000000e+00> : vector<16xf32>
    %133 = vector.multi_reduction <add>, %100, %cst_34 [1] : vector<16x16xf32> to vector<16xf32>
    %134 = vector.shape_cast %133 : vector<16xf32> to vector<16x1xf32>
    %cst_35 = arith.constant 6.250000e-02 : f32
    %135 = vector.broadcast %cst_35 : f32 to vector<16x1xf32>
    %136 = arith.mulf %134, %135 : vector<16x1xf32>
    %137 = arith.subf %124, %128 : vector<1x16xf32>
    %138 = math.absf %137 : vector<1x16xf32>
    %139 = vector.shape_cast %138 : vector<1x16xf32> to vector<1x1x16xf32>
    %cst_36 = arith.constant dense<0x7F800000> : vector<1xf32>
    %140 = vector.multi_reduction <minimumf>, %139, %cst_36 [1, 2] : vector<1x1x16xf32> to vector<1xf32>
    %141 = vector.shape_cast %140 : vector<1xf32> to vector<1x1x1xf32>
    %142 = vector.extract %141[0, 0, 0] : f32 from vector<1x1x1xf32>
    %143 = vector.broadcast %142 : f32 to vector<1x1xf32>
    %144 = vector.shape_cast %138 : vector<1x16xf32> to vector<1x1x16xf32>
    %cst_37 = arith.constant dense<0xFF800000> : vector<1xf32>
    %145 = vector.multi_reduction <maximumf>, %144, %cst_37 [1, 2] : vector<1x1x16xf32> to vector<1xf32>
    %146 = vector.shape_cast %145 : vector<1xf32> to vector<1x1x1xf32>
    %147 = vector.extract %146[0, 0, 0] : f32 from vector<1x1x1xf32>
    %148 = vector.broadcast %147 : f32 to vector<1x1xf32>
    %149 = arith.subf %148, %143 : vector<1x1xf32>
    %150 = tpu.reciprocal %149 {approx = true} : vector<1x1xf32> -> vector<1x1xf32>
    %cst_38 = arith.constant 1.000000e+01 : f32
    %151 = vector.broadcast %cst_38 : f32 to vector<1x1xf32>
    %152 = arith.mulf %151, %150 : vector<1x1xf32>
    %153 = vector.broadcast %143 : vector<1x1xf32> to vector<1x16xf32>
    %154 = arith.subf %138, %153 : vector<1x16xf32>
    %155 = vector.broadcast %152 : vector<1x1xf32> to vector<1x16xf32>
    %156 = arith.mulf %154, %155 : vector<1x16xf32>
    %157 = arith.mulf %156, %137 : vector<1x16xf32>
    %158 = math.absf %157 : vector<1x16xf32>
    %159 = vector.shape_cast %158 : vector<1x16xf32> to vector<1x1x16xf32>
    %cst_39 = arith.constant dense<0.000000e+00> : vector<1xf32>
    %160 = vector.multi_reduction <add>, %159, %cst_39 [1, 2] : vector<1x1x16xf32> to vector<1xf32>
    %161 = vector.shape_cast %160 : vector<1xf32> to vector<1x1x1xf32>
    %162 = vector.extract %161[0, 0, 0] : f32 from vector<1x1x1xf32>
    %163 = vector.broadcast %162 : f32 to vector<1x1xf32>
    %cst_40 = arith.constant 6.250000e-02 : f32
    %164 = vector.broadcast %cst_40 : f32 to vector<1x1xf32>
    %165 = arith.mulf %163, %164 : vector<1x1xf32>
    %166 = arith.addf %98, %165 : vector<1x1xf32>
    %167 = arith.subf %132, %136 : vector<16x1xf32>
    %168 = math.absf %167 : vector<16x1xf32>
    %169 = vector.shape_cast %168 : vector<16x1xf32> to vector<1x16x1xf32>
    %cst_41 = arith.constant dense<0x7F800000> : vector<1xf32>
    %170 = vector.multi_reduction <minimumf>, %169, %cst_41 [1, 2] : vector<1x16x1xf32> to vector<1xf32>
    %171 = vector.shape_cast %170 : vector<1xf32> to vector<1x1x1xf32>
    %172 = vector.extract %171[0, 0, 0] : f32 from vector<1x1x1xf32>
    %173 = vector.broadcast %172 : f32 to vector<1x1xf32>
    %174 = vector.shape_cast %168 : vector<16x1xf32> to vector<1x16x1xf32>
    %cst_42 = arith.constant dense<0xFF800000> : vector<1xf32>
    %175 = vector.multi_reduction <maximumf>, %174, %cst_42 [1, 2] : vector<1x16x1xf32> to vector<1xf32>
    %176 = vector.shape_cast %175 : vector<1xf32> to vector<1x1x1xf32>
    %177 = vector.extract %176[0, 0, 0] : f32 from vector<1x1x1xf32>
    %178 = vector.broadcast %177 : f32 to vector<1x1xf32>
    %179 = arith.subf %178, %173 : vector<1x1xf32>
    %180 = tpu.reciprocal %179 {approx = true} : vector<1x1xf32> -> vector<1x1xf32>
    %cst_43 = arith.constant 1.000000e+01 : f32
    %181 = vector.broadcast %cst_43 : f32 to vector<1x1xf32>
    %182 = arith.mulf %181, %180 : vector<1x1xf32>
    %183 = vector.broadcast %173 : vector<1x1xf32> to vector<16x1xf32>
    %184 = arith.subf %168, %183 : vector<16x1xf32>
    %185 = vector.broadcast %182 : vector<1x1xf32> to vector<16x1xf32>
    %186 = arith.mulf %184, %185 : vector<16x1xf32>
    %187 = arith.mulf %186, %167 : vector<16x1xf32>
    %188 = math.absf %187 : vector<16x1xf32>
    %189 = vector.shape_cast %188 : vector<16x1xf32> to vector<1x16x1xf32>
    %cst_44 = arith.constant dense<0.000000e+00> : vector<1xf32>
    %190 = vector.multi_reduction <add>, %189, %cst_44 [1, 2] : vector<1x16x1xf32> to vector<1xf32>
    %191 = vector.shape_cast %190 : vector<1xf32> to vector<1x1x1xf32>
    %192 = vector.extract %191[0, 0, 0] : f32 from vector<1x1x1xf32>
    %193 = vector.broadcast %192 : f32 to vector<1x1xf32>
    %cst_45 = arith.constant 6.250000e-02 : f32
    %194 = vector.broadcast %cst_45 : f32 to vector<1x1xf32>
    %195 = arith.mulf %193, %194 : vector<1x1xf32>
    %196 = arith.addf %166, %195 : vector<1x1xf32>
    %197 = vector.shape_cast %196 : vector<1x1xf32> to vector<1x1x1xf32>
    %cst_46 = arith.constant dense<0.000000e+00> : vector<1xf32>
    %198 = vector.multi_reduction <add>, %197, %cst_46 [1, 2] : vector<1x1x1xf32> to vector<1xf32>
    %199 = vector.shape_cast %198 : vector<1xf32> to vector<1x1x1xf32>
    %200 = vector.extract %199[0, 0, 0] : f32 from vector<1x1x1xf32>
    %cst_47 = arith.constant 5.000000e-01 : f32
    %201 = arith.mulf %200, %cst_47 : f32
    %c0_48 = arith.constant 0 : index
    %c0_49 = arith.constant 0 : index
    %202 = memref.load %arg2[%c0_48, %c0_49] : memref<1x1xf32, #tpu.memory_space<smem>>
    memref.store %201, %arg2[%c0_48, %c0_49] : memref<1x1xf32, #tpu.memory_space<smem>>
    return
  }
}

</mosaic_0001>

<llo_original>
// kernel: tpu_custom_call.1
$region0: #{tpu_custom_call.1}
  #allocation0 [shape = 'u32[]', space=smem, size = 0x4, offset = 0x4, fixed_abs, tag = 'smem constant byte address 0x4 - core index']
  #allocation1 [shape = 'u32[144,128]{1,0:T(1,128)}', space=vmem, size = 0x12000, scoped, tag = 'internal scratch']
  %s0 = inlined_call_operand.vmem [shape: f32[32,16], index: 0, kind: input, shape index: {}]
  %s1 = inlined_call_operand.vmem [shape: f32[32,16], index: 1, kind: input, shape index: {}]
  %s2 = inlined_call_operand.hbm [shape: f32[1,1], index: 2, kind: output, shape index: {}]
  %s3 = sld [smem:[#allocation0]]
  $region18: #{tpu_custom_call.1} parent=0
    _
  %s5 = ssub.s32 1, %s3
  %s6 = scalar_select 0, %s5, %s3
  $region1: #{tpu_custom_call.1} parent=0
    #allocation2 [shape = 'u8[512]{0}', space=smem, size = 0x200, scoped, tag = 'output window, operand 0, single buffered']
    #allocation3 [shape = 's32[1]{0}', space=sflag, size = 0x4, scoped, tag = 'scoped memory for tpu_custom_call.1']
    %7 = vsyncpa [#allocation3], 0
    // Predicated region
    $region2: #{tpu_custom_call.1} parent=1 // pred_check
      _
    $region3: #{tpu_custom_call.1} parent=1 // pred_check_branch
      %9 = sbr.rel (0) target = $region5
    $region4: #{tpu_custom_call.1} parent=1 // pred_region
      _
    $region5: #{tpu_custom_call.1} parent=1 // pred_fallthru
      _
    // Predicated region
    $region6: #{tpu_custom_call.1} parent=1 // pred_check
      _
    $region7: #{tpu_custom_call.1} parent=1 // pred_check_branch
      %11 = sbr.rel (0) target = $region9
    $region8: #{tpu_custom_call.1} parent=1 // pred_region
      _
    $region9: #{tpu_custom_call.1} parent=1 // pred_fallthru
      _
    %v12 = vld [vmem:[%s0] sm:$0xff]
    %v13 = vld [vmem:[%s0 + $0x8] sm:$0xff]
    %v14 = vld [vmem:[%s1] sm:$0xff]
    %v15 = vld [vmem:[%s1 + $0x8] sm:$0xff]
    %v17 = vrot.slane %v14, 1
    %vm20 = vcmask 1040384
    %v21 = vrot.slane %v14, 7
    %v22 = vrot.slane %v15, 7
    %v23 = vsel %vm20, %v21, %v22
    %v26 = vsel %vm20, %v17, %v21
    %vm27 = vcmask 1046528
    %v28 = vrot.slane %v15, 1
    %v29 = vsel %vm27, %v17, %v28
    %v33 = vsel %vm27, %v28, %v22
    %34 = vrot.lane.b32.xlu0 %v14, 127
    %v35 = vpop.permute.xlu0 %34
    %36 = vrot.lane.b32.xlu0 %v15, 127
    %v37 = vpop.permute.xlu0 %36
    %40 = vrot.lane.b32.xlu0 %v14, 1
    %v41 = vpop.permute.xlu0 %40
    %42 = vrot.lane.b32.xlu0 %v15, 1
    %v43 = vpop.permute.xlu0 %42
    %vm46 = vcmask 7168
    %v47 = vsel %vm46, %v35, %v41
    %v48 = vsel %vm46, %v37, %v43
    %vm49 = vcmask 121856
    %v50 = vsel %vm49, %v35, %v41
    %v51 = vsel %vm49, %v37, %v43
    %v52 = vadd.f32 %v26, %v29
    %v53 = vadd.f32 %v23, %v33
    %v54 = vadd.f32 %v52, %v47
    %v55 = vadd.f32 %v53, %v48
    %v56 = vadd.f32 %v54, %v50
    %v57 = vadd.f32 %v55, %v51
    %v58 = vmul.f32 %v56, 0.25
    %v59 = vmul.f32 %v57, 0.25
    %v60 = vmul.f32 %v12, 1.1111111e-05
    %v61 = vmul.f32 %v13, 1.1111111e-05
    %v62 = vadd.f32 %v58, %v60
    %v63 = vadd.f32 %v59, %v61
    %vm64 = vcmask 130048
    %v65 = vsel %vm64, %v62, 0.0
    %v66 = vsel %vm64, %v63, 0.0
    %v67 = vadd.f32 %v65, %v66
    %v68 = vrot.slane %v67, 4
    %v69 = vadd.f32 %v67, %v68
    %v70 = vrot.slane %v69, 2
    %v71 = vadd.f32 %v69, %v70
    %v72 = vrot.slane %v71, 1
    %v73 = vadd.f32 %v71, %v72
    %v74 = vmul.f32 %v73, 0.0625
    %v75 = vsel %vm64, %v14, 0.0
    %v76 = vsel %vm64, %v15, 0.0
    %v77 = vadd.f32 %v75, %v76
    %v78 = vrot.slane %v77, 4
    %v79 = vadd.f32 %v77, %v78
    %v80 = vrot.slane %v79, 2
    %v81 = vadd.f32 %v79, %v80
    %v82 = vrot.slane %v81, 1
    %v83 = vadd.f32 %v81, %v82
    %v84 = vmul.f32 %v83, 0.0625
    %85 = vadd.xlane.f32.xlu0 %v65
    %v86 = vpop.xlane.xlu0 %85
    %87 = vadd.xlane.f32.xlu0 %v66
    %v88 = vpop.xlane.xlu0 %87
    %v89 = vmul.f32 %v86, 0.0625
    %v90 = vmul.f32 %v88, 0.0625
    %91 = vadd.xlane.f32.xlu0 %v75
    %v92 = vpop.xlane.xlu0 %91
    %93 = vadd.xlane.f32.xlu0 %v76
    %v94 = vpop.xlane.xlu0 %93
    %v95 = vmul.f32 %v92, 0.0625
    %v96 = vmul.f32 %v94, 0.0625
    %v97 = vsub.f32 %v74, %v84
    %v98 = vand.u32 2147483647, %v97
    %v99 = vsel %vm64, %v98, inf
    %100 = vmin.xlane.f32.xlu0 %v99
    %v101 = vpop.xlane.xlu0 %100
    %s102 = vtos %v101
    %v103 = vstv %s102
    %v104 = vsel %vm64, %v98, -inf
    %105 = vmax.xlane.f32.xlu0 %v104
    %v106 = vpop.xlane.xlu0 %105
    %s107 = vtos %v106
    %v108 = vstv %s107
    %v109 = vsub.f32 %v108, %v103
    %v110 = vrcp.pop %v109
    %v111 = vmul.f32 %v110, 10.0
    %v112 = vsub.f32 %v98, %v103
    %v113 = vmul.f32 %v112, %v111
    %v114 = vmul.f32 %v113, %v97
    %v115 = vand.u32 2147483647, %v114
    %vm116 = vcmask 122880
    %v117 = vsel %vm116, %v115, 0.0
    %118 = vadd.xlane.f32.xlu0 %v117
    %v119 = vpop.xlane.xlu0 %118
    %v120 = vrot.slane %v119, 4
    %v121 = vadd.f32 %v119, %v120
    %v122 = vrot.slane %v121, 2
    %v123 = vadd.f32 %v121, %v122
    %v124 = vrot.slane %v123, 1
    %v125 = vadd.f32 %v123, %v124
    %s126 = vtos %v125
    %v127 = vstv %s126
    %v128 = vmul.f32 %v127, 0.0625
    %v129 = vadd.f32 %v128, 0.0
    %v130 = vsub.f32 %v89, %v95
    %v131 = vsub.f32 %v90, %v96
    %v132 = vand.u32 2147483647, %v130
    %v133 = vand.u32 2147483647, %v131
    %v134 = vmin.f32 %v132, %v133
    %v135 = vrot.slane %v134, 4
    %v136 = vmin.f32 %v134, %v135
    %v137 = vrot.slane %v136, 2
    %v138 = vmin.f32 %v136, %v137
    %v139 = vrot.slane %v138, 1
    %v140 = vmin.f32 %v138, %v139
    %s141 = vtos %v140
    %v142 = vstv %s141
    %v143 = vmax.f32 %v132, %v133
    %v144 = vrot.slane %v143, 4
    %v145 = vmax.f32 %v143, %v144
    %v146 = vrot.slane %v145, 2
    %v147 = vmax.f32 %v145, %v146
    %v148 = vrot.slane %v147, 1
    %v149 = vmax.f32 %v147, %v148
    %s150 = vtos %v149
    %v151 = vstv %s150
    %v152 = vsub.f32 %v151, %v142
    %v153 = vrcp.pop %v152
    %v154 = vmul.f32 %v153, 10.0
    %v155 = vsub.f32 %v132, %v142
    %v156 = vsub.f32 %v133, %v142
    %v157 = vmul.f32 %v155, %v154
    %v158 = vmul.f32 %v156, %v154
    %v159 = vmul.f32 %v157, %v130
    %v160 = vmul.f32 %v158, %v131
    %v161 = vand.u32 2147483647, %v159
    %v162 = vand.u32 2147483647, %v160
    %v163 = vsel %vm46, %v161, 0.0
    %v164 = vsel %vm46, %v162, 0.0
    %v165 = vadd.f32 %v163, %v164
    %166 = vadd.xlane.f32.xlu0 %v165
    %v167 = vpop.xlane.xlu0 %166
    %v168 = vrot.slane %v167, 4
    %v169 = vadd.f32 %v167, %v168
    %v170 = vrot.slane %v169, 2
    %v171 = vadd.f32 %v169, %v170
    %v172 = vrot.slane %v171, 1
    %v173 = vadd.f32 %v171, %v172
    %s174 = vtos %v173
    %v175 = vstv %s174
    %v176 = vmul.f32 %v175, 0.0625
    %v177 = vadd.f32 %v129, %v176
    %v178 = vld [vmem:[%s0 + $0x10] sm:$0xff]
    %v179 = vld [vmem:[%s0 + $0x18] sm:$0xff]
    %v180 = vld [vmem:[%s1 + $0x10] sm:$0xff]
    %v181 = vld [vmem:[%s1 + $0x18] sm:$0xff]
    %v183 = vrot.slane %v180, 1
    %v186 = vrot.slane %v180, 7
    %v187 = vrot.slane %v181, 7
    %v188 = vsel %vm20, %v186, %v187
    %v191 = vsel %vm20, %v183, %v186
    %v192 = vrot.slane %v181, 1
    %v193 = vsel %vm27, %v183, %v192
    %v197 = vsel %vm27, %v192, %v187
    %198 = vrot.lane.b32.xlu0 %v180, 127
    %v199 = vpop.permute.xlu0 %198
    %200 = vrot.lane.b32.xlu0 %v181, 127
    %v201 = vpop.permute.xlu0 %200
    %204 = vrot.lane.b32.xlu0 %v180, 1
    %v205 = vpop.permute.xlu0 %204
    %206 = vrot.lane.b32.xlu0 %v181, 1
    %v207 = vpop.permute.xlu0 %206
    %v210 = vsel %vm46, %v199, %v205
    %v211 = vsel %vm46, %v201, %v207
    %v212 = vsel %vm49, %v199, %v205
    %v213 = vsel %vm49, %v201, %v207
    %v214 = vadd.f32 %v191, %v193
    %v215 = vadd.f32 %v188, %v197
    %v216 = vadd.f32 %v214, %v210
    %v217 = vadd.f32 %v215, %v211
    %v218 = vadd.f32 %v216, %v212
    %v219 = vadd.f32 %v217, %v213
    %v220 = vmul.f32 %v218, 0.25
    %v221 = vmul.f32 %v219, 0.25
    %v222 = vmul.f32 %v178, 1.1111111e-05
    %v223 = vmul.f32 %v179, 1.1111111e-05
    %v224 = vadd.f32 %v220, %v222
    %v225 = vadd.f32 %v221, %v223
    %v226 = vsel %vm64, %v224, 0.0
    %v227 = vsel %vm64, %v225, 0.0
    %v228 = vadd.f32 %v226, %v227
    %v229 = vrot.slane %v228, 4
    %v230 = vadd.f32 %v228, %v229
    %v231 = vrot.slane %v230, 2
    %v232 = vadd.f32 %v230, %v231
    %v233 = vrot.slane %v232, 1
    %v234 = vadd.f32 %v232, %v233
    %v235 = vmul.f32 %v234, 0.0625
    %v236 = vsel %vm64, %v180, 0.0
    %v237 = vsel %vm64, %v181, 0.0
    %v238 = vadd.f32 %v236, %v237
    %v239 = vrot.slane %v238, 4
    %v240 = vadd.f32 %v238, %v239
    %v241 = vrot.slane %v240, 2
    %v242 = vadd.f32 %v240, %v241
    %v243 = vrot.slane %v242, 1
    %v244 = vadd.f32 %v242, %v243
    %v245 = vmul.f32 %v244, 0.0625
    %246 = vadd.xlane.f32.xlu0 %v226
    %v247 = vpop.xlane.xlu0 %246
    %248 = vadd.xlane.f32.xlu0 %v227
    %v249 = vpop.xlane.xlu0 %248
    %v250 = vmul.f32 %v247, 0.0625
    %v251 = vmul.f32 %v249, 0.0625
    %252 = vadd.xlane.f32.xlu0 %v236
    %v253 = vpop.xlane.xlu0 %252
    %254 = vadd.xlane.f32.xlu0 %v237
    %v255 = vpop.xlane.xlu0 %254
    %v256 = vmul.f32 %v253, 0.0625
    %v257 = vmul.f32 %v255, 0.0625
    %v258 = vsub.f32 %v235, %v245
    %v259 = vand.u32 2147483647, %v258
    %v260 = vsel %vm64, %v259, inf
    %261 = vmin.xlane.f32.xlu0 %v260
    %v262 = vpop.xlane.xlu0 %261
    %s263 = vtos %v262
    %v264 = vstv %s263
    %v265 = vsel %vm64, %v259, -inf
    %266 = vmax.xlane.f32.xlu0 %v265
    %v267 = vpop.xlane.xlu0 %266
    %s268 = vtos %v267
    %v269 = vstv %s268
    %v270 = vsub.f32 %v269, %v264
    %v271 = vrcp.pop %v270
    %v272 = vmul.f32 %v271, 10.0
    %v273 = vsub.f32 %v259, %v264
    %v274 = vmul.f32 %v273, %v272
    %v275 = vmul.f32 %v274, %v258
    %v276 = vand.u32 2147483647, %v275
    %v277 = vsel %vm116, %v276, 0.0
    %278 = vadd.xlane.f32.xlu0 %v277
    %v279 = vpop.xlane.xlu0 %278
    %v280 = vrot.slane %v279, 4
    %v281 = vadd.f32 %v279, %v280
    %v282 = vrot.slane %v281, 2
    %v283 = vadd.f32 %v281, %v282
    %v284 = vrot.slane %v283, 1
    %v285 = vadd.f32 %v283, %v284
    %s286 = vtos %v285
    %v287 = vstv %s286
    %v288 = vmul.f32 %v287, 0.0625
    %v289 = vadd.f32 %v177, %v288
    %v290 = vsub.f32 %v250, %v256
    %v291 = vsub.f32 %v251, %v257
    %v292 = vand.u32 2147483647, %v290
    %v293 = vand.u32 2147483647, %v291
    %v294 = vmin.f32 %v292, %v293
    %v295 = vrot.slane %v294, 4
    %v296 = vmin.f32 %v294, %v295
    %v297 = vrot.slane %v296, 2
    %v298 = vmin.f32 %v296, %v297
    %v299 = vrot.slane %v298, 1
    %v300 = vmin.f32 %v298, %v299
    %s301 = vtos %v300
    %v302 = vstv %s301
    %v303 = vmax.f32 %v292, %v293
    %v304 = vrot.slane %v303, 4
    %v305 = vmax.f32 %v303, %v304
    %v306 = vrot.slane %v305, 2
    %v307 = vmax.f32 %v305, %v306
    %v308 = vrot.slane %v307, 1
    %v309 = vmax.f32 %v307, %v308
    %s310 = vtos %v309
    %v311 = vstv %s310
    %v312 = vsub.f32 %v311, %v302
    %v313 = vrcp.pop %v312
    %v314 = vmul.f32 %v313, 10.0
    %v315 = vsub.f32 %v292, %v302
    %v316 = vsub.f32 %v293, %v302
    %v317 = vmul.f32 %v315, %v314
    %v318 = vmul.f32 %v316, %v314
    %v319 = vmul.f32 %v317, %v290
    %v320 = vmul.f32 %v318, %v291
    %v321 = vand.u32 2147483647, %v319
    %v322 = vand.u32 2147483647, %v320
    %v323 = vsel %vm46, %v321, 0.0
    %v324 = vsel %vm46, %v322, 0.0
    %v325 = vadd.f32 %v323, %v324
    %326 = vadd.xlane.f32.xlu0 %v325
    %v327 = vpop.xlane.xlu0 %326
    %v328 = vrot.slane %v327, 4
    %v329 = vadd.f32 %v327, %v328
    %v330 = vrot.slane %v329, 2
    %v331 = vadd.f32 %v329, %v330
    %v332 = vrot.slane %v331, 1
    %v333 = vadd.f32 %v331, %v332
    %s334 = vtos %v333
    %v335 = vstv %s334
    %v336 = vmul.f32 %v335, 0.0625
    %v337 = vadd.f32 %v289, %v336
    %v338 = vadd.f32 %v337, 0.0
    %s339 = vtos %v338
    %s340 = smul.f32 %s339, 0.5
    %s341 = scalar_lea.smem [#allocation2], 0
    %342 = sst [smem:[%s341]] %s340
    // Predicated region
    $region10: #{tpu_custom_call.1} parent=1 // pred_check
      _
    $region11: #{tpu_custom_call.1} parent=1 // pred_check_branch
      %344 = sbr.rel (0) target = $region13
    $region12: #{tpu_custom_call.1} parent=1 // pred_region
      %s346 = ssub.s32 16, 16
      %347 = vsyncadd [#allocation3], %s346
      %350 = dma.smem_to_hbm [#allocation2], 16, %s2, [#allocation3]
    $region13: #{tpu_custom_call.1} parent=1 // pred_fallthru
      _
    // Predicated region
    $region14: #{tpu_custom_call.1} parent=1 // pred_check
      _
    $region15: #{tpu_custom_call.1} parent=1 // pred_check_branch
      %352 = sbr.rel (0) target = $region17
    $region16: #{tpu_custom_call.1} parent=1 // pred_region
      %353 = dma.done [#allocation3], 16
    $region17: #{tpu_custom_call.1} parent=1 // pred_fallthru
      _
    %354 = sfence
    %355 = vsyncpa [#allocation3], 1

</llo_original>
